<compile_context>
chip_gen: v6e
topology: v6e:2x2x1
jax: 0.10.0
libtpu: 0.0.40
codegen_flags: <defaults>
</compile_context>

<pallas_src>
import jax
import jax.numpy as jnp
from jax.experimental import pallas as pl
from jax.experimental.pallas import tpu as pltpu


def _dirsage_agg_kernel(zs_ref, zin_ref, zout_ref, ain_ref, aout_ref, o_ref, acc_ref):
    """One (node-row tile i, neighbor tile k) grid step.

    zs_ref  : [tn, T*F_out]  f32   X@W_self + b_comb   (this row tile; used at finalize)
    zin_ref : [tk, T*F_out]  bf16  X@((1-a) W_in)      (this neighbor tile)
    zout_ref: [tk, T*F_out]  bf16  X@(a W_out)         (this neighbor tile)
    ain_ref : [tn, tk]       bf16  row-normalized in-adjacency tile  (src -> dst flow)
    aout_ref: [tn, tk]       bf16  row-normalized out-adjacency tile (dst -> src flow)
    o_ref   : [tn, T*F_out]        output tile (written once, at the last K step)
    acc_ref : [tn, T*F_out]  f32   VMEM accumulator (persists across the K axis)
    """
    k = pl.program_id(1)

    @pl.when(k == 0)
    def _init():
        acc_ref[...] = jnp.zeros_like(acc_ref)

    # Heavy part: two lane-dense MXU matmuls contracting over this neighbor tile,
    # all T timesteps batched into the (T*F_out) lane dimension, f32 accumulation.
    acc_ref[...] += jnp.dot(ain_ref[...], zin_ref[...],
                            preferred_element_type=jnp.float32)
    acc_ref[...] += jnp.dot(aout_ref[...], zout_ref[...],
                            preferred_element_type=jnp.float32)

    @pl.when(k == pl.num_programs(1) - 1)
    def _finalize():
        o_ref[...] = (acc_ref[...] + zs_ref[...]).astype(o_ref.dtype)


def _pick_node_tile(n):
    """Row-tile size.

    Big graphs: 256 to fill the MXU M dimension on v6e/v7x.  Small graphs: aim for
    >= 2 row tiles so both v7x TensorCores can take work.  Must divide n and be a
    multiple of 8 (sublane), else fall back to a single full block.
    """
    if n >= 512:
        pref = 256
    elif n >= 256:
        pref = 128
    else:
        pref = max(8, ((n // 2 + 7) // 8) * 8)
    for t in range(min(pref, n), 7, -1):
        if n % t == 0 and t % 8 == 0:
            return t
    return n


def _pick_neighbor_tile(n, tn, lanes_out, out_bytes, vmem_budget):
    """Neighbor (contraction) tile: full N when the resident footprint fits the
    budget, otherwise the largest lane-aligned (multiple of 128) divisor of n that
    fits."""
    def footprint(tk):
        z = 2 * (tk * lanes_out * 2) * 2          # z_in + z_out (bf16, double-buffered)
        a = 2 * (tn * tk * 2) * 2                 # a_in + a_out tiles (bf16, double-buffered)
        zs = (tn * lanes_out * 4) * 2             # self path (f32, double-buffered)
        out = (tn * lanes_out * out_bytes) * 2    # output tile (double-buffered)
        acc = tn * lanes_out * 4                  # f32 accumulator scratch
        return z + a + zs + out + acc

    if footprint(n) <= vmem_budget:
        return n
    candidates = [t for t in range(128, n, 128) if n % t == 0]
    for t in sorted(candidates, reverse=True):
        if footprint(t) <= vmem_budget:
            return t
    if candidates:
        return candidates[0]
    # TODO(synk): pad N to a lane-aligned size before K-tiling very large ragged graphs.
    return n


def dir_sage_conv(x, a_in, a_out, w_self, w_in, w_out, b_self, b_in, b_out, alpha,
                  *, node_tile=None, neighbor_tile=None,
                  compute_dtype=jnp.bfloat16, out_dtype=None):
    """x: [N, T, F_in]; a_in/a_out: [N, N] row-normalized; w_*: [F_in, F_out]; b_*: [F_out]."""
    N, T, F_in = x.shape
    F_out = w_self.shape[1]
    TFo = T * F_out
    if out_dtype is None:
        out_dtype = x.dtype
    out_bytes = jnp.dtype(out_dtype).itemsize

    # Generation-aware VMEM budget (64 MiB physical on v7x, 128 MiB on v5e/v6e).
    try:
        vmem_cap = int(pltpu.get_tpu_info().vmem_capacity_bytes)
    except Exception:  # conservative fallback = smallest generation (v7x)
        vmem_cap = 64 * 1024 * 1024
    vmem_limit = min(vmem_cap - 8 * 1024 * 1024, 100 * 1024 * 1024)

    if node_tile is None:
        node_tile = _pick_node_tile(N)
    assert N % node_tile == 0 and (node_tile % 8 == 0 or node_tile == N)
    if neighbor_tile is None:
        neighbor_tile = _pick_neighbor_tile(N, node_tile, TFo, out_bytes,
                                            int(0.85 * vmem_limit))
    assert N % neighbor_tile == 0 and (neighbor_tile % 128 == 0 or neighbor_tile == N)

    # Hoisted feature transforms (cheap K = F_in matmuls, left to plain XLA):
    #   zs    = X @ W_self + (b_self + (1-a) b_in + a b_out)   -> added at finalize
    #   z_in  = X @ ((1-a) W_in),  z_out = X @ (a W_out)       -> aggregated in-kernel
    x32 = x.astype(jnp.float32)
    b_comb = (b_self + (1.0 - alpha) * b_in + alpha * b_out).astype(jnp.float32)
    zs = (jnp.einsum('ntf,fo->nto', x32, w_self.astype(jnp.float32)) + b_comb)
    zs = zs.reshape(N, TFo).astype(jnp.float32)
    z_in = jnp.einsum('ntf,fo->nto', x32, ((1.0 - alpha) * w_in).astype(jnp.float32))
    z_in = z_in.reshape(N, TFo).astype(compute_dtype)
    z_out = jnp.einsum('ntf,fo->nto', x32, (alpha * w_out).astype(jnp.float32))
    z_out = z_out.reshape(N, TFo).astype(compute_dtype)

    a_in_c = a_in.astype(compute_dtype)
    a_out_c = a_out.astype(compute_dtype)

    grid = (N // node_tile, N // neighbor_tile)
    out_wide = pl.pallas_call(
        _dirsage_agg_kernel,
        out_shape=jax.ShapeDtypeStruct((N, TFo), out_dtype),
        grid=grid,
        in_specs=[
            pl.BlockSpec((node_tile, TFo), lambda i, k: (i, 0)),            # zs row tile
            pl.BlockSpec((neighbor_tile, TFo), lambda i, k: (k, 0)),        # z_in  K tile
            pl.BlockSpec((neighbor_tile, TFo), lambda i, k: (k, 0)),        # z_out K tile
            pl.BlockSpec((node_tile, neighbor_tile), lambda i, k: (i, k)),  # A_in tile
            pl.BlockSpec((node_tile, neighbor_tile), lambda i, k: (i, k)),  # A_out tile
        ],
        out_specs=pl.BlockSpec((node_tile, TFo), lambda i, k: (i, 0)),
        scratch_shapes=[pltpu.VMEM((node_tile, TFo), jnp.float32)],
        compiler_params=pltpu.CompilerParams(
            dimension_semantics=("parallel", "arbitrary"),
            vmem_limit_bytes=vmem_limit,
        ),
    )(zs, z_in, z_out, a_in_c, a_out_c)
    return out_wide.reshape(N, T, F_out)


def build_mean_adjacency(edge_index, num_nodes):
    """Dense row-normalized adjacencies for both message-passing flows.

    A_in[i, j]  = 1/deg_in(i)  if edge (j -> i)   (flow='source_to_target')
    A_out[i, j] = 1/deg_out(i) if edge (i -> j)   (flow='target_to_source')
    Rows with no neighbors aggregate to 0 (matches PyG mean scatter).
    """
    src, dst = edge_index[0], edge_index[1]
    a = jnp.zeros((num_nodes, num_nodes), jnp.float32)
    a_in = a.at[dst, src].add(1.0)
    a_out = a.at[src, dst].add(1.0)
    a_in = a_in / jnp.maximum(a_in.sum(axis=1, keepdims=True), 1.0)
    a_out = a_out / jnp.maximum(a_out.sum(axis=1, keepdims=True), 1.0)
    return a_in, a_out


def reference(x, a_in, a_out, w_self, w_in, w_out, b_self, b_in, b_out, alpha):
    # Pure-JAX f32 reference of the module forward (for correctness check).
    agg_in = jnp.einsum('nm,mtf->ntf', a_in, x)
    agg_out = jnp.einsum('nm,mtf->ntf', a_out, x)
    return (x @ w_self + b_self
            + (1.0 - alpha) * (agg_in @ w_in + b_in)
            + alpha * (agg_out @ w_out + b_out))


if __name__ == "__main__":
    # Small, deterministic problem.
    N, T, F_in, F_out, E = 16, 8, 32, 32, 40
    alpha = 0.5

    key = jax.random.PRNGKey(0)
    kx, ke1, ke2, kws, kwi, kwo, kbs, kbi, kbo = jax.random.split(key, 9)

    x = jax.random.normal(kx, (N, T, F_in), dtype=jnp.float32)
    edge_index = jnp.stack([
        jax.random.randint(ke1, (E,), 0, N),
        jax.random.randint(ke2, (E,), 0, N),
    ], axis=0)  # [2, E]

    # Parameters (PyTorch Linear stores W as [out, in]; we keep the transposed
    # [in, out] layout for the kernel).
    scale = 1.0 / jnp.sqrt(F_in)
    w_self = (jax.random.normal(kws, (F_in, F_out)) * scale).astype(jnp.float32)
    w_in = (jax.random.normal(kwi, (F_in, F_out)) * scale).astype(jnp.float32)
    w_out = (jax.random.normal(kwo, (F_in, F_out)) * scale).astype(jnp.float32)
    b_self = (jax.random.normal(kbs, (F_out,)) * scale).astype(jnp.float32)
    b_in = (jax.random.normal(kbi, (F_out,)) * scale).astype(jnp.float32)
    b_out = (jax.random.normal(kbo, (F_out,)) * scale).astype(jnp.float32)

    a_in, a_out = build_mean_adjacency(edge_index, N)

    out = dir_sage_conv(x, a_in, a_out, w_self, w_in, w_out,
                        b_self, b_in, b_out, alpha)
    out = jax.block_until_ready(out)

    ref = reference(x, a_in, a_out, w_self, w_in, w_out, b_self, b_in, b_out, alpha)
    assert out.shape == (N, T, F_out)
    # bf16 MXU inputs with f32 accumulation -> loosened tolerance vs. f32 reference.
    assert jnp.allclose(out, ref, atol=2e-2, rtol=2e-2)

    print("KERNEL_OK")
</pallas_src>

<mosaic_0001>
module attributes {stable_mosaic.version = 11 : i64} {
  func.func @_dirsage_agg_kernel(%arg0: i32, %arg1: i32, %arg2: memref<8x256xf32, #tpu.memory_space<vmem>>, %arg3: memref<16x256xbf16, #tpu.memory_space<vmem>>, %arg4: memref<16x256xbf16, #tpu.memory_space<vmem>>, %arg5: memref<8x16xbf16, #tpu.memory_space<vmem>>, %arg6: memref<8x16xbf16, #tpu.memory_space<vmem>>, %arg7: memref<8x256xf32, #tpu.memory_space<vmem>>, %arg8: memref<8x256xf32, #tpu.memory_space<vmem>>) attributes {dimension_semantics = [#tpu.dimension_semantics<parallel>, #tpu.dimension_semantics<arbitrary>], iteration_bounds = array<i64: 2, 1>, scalar_prefetch = 0 : i64, scratch_operands = 1 : i64, tpu.core_type = #tpu.core_type<tc>, window_params = [{transform_indices = @transform_0, window_bounds = array<i64: 8, 256>}, {transform_indices = @transform_1, window_bounds = array<i64: 16, 256>}, {transform_indices = @transform_2, window_bounds = array<i64: 16, 256>}, {transform_indices = @transform_3, window_bounds = array<i64: 8, 16>}, {transform_indices = @transform_4, window_bounds = array<i64: 8, 16>}, {transform_indices = @transform_5, window_bounds = array<i64: 8, 256>}]} {
    %c0_i32 = arith.constant 0 : i32
    %0 = arith.cmpi eq, %arg1, %c0_i32 : i32
    %1 = arith.extui %0 : i1 to i32
    %c0_i32_0 = arith.constant 0 : i32
    %2 = arith.cmpi ne, %1, %c0_i32_0 : i32
    scf.if %2 {
      %cst_19 = arith.constant 0.000000e+00 : f32
      %18 = vector.broadcast %cst_19 : f32 to vector<8x256xf32>
      %c0_20 = arith.constant 0 : index
      %c0_21 = arith.constant 0 : index
      %19 = vector.load %arg8[%c0_20, %c0_21] : memref<8x256xf32, #tpu.memory_space<vmem>>, vector<8x256xf32>
      tpu.vector_store %arg8[%c0_20, %c0_21], %18 {strides = array<i32>} : memref<8x256xf32, #tpu.memory_space<vmem>>, vector<8x256xf32>,
    } else {
    }
    %c0 = arith.constant 0 : index
    %c0_1 = arith.constant 0 : index
    %3 = vector.load %arg8[%c0, %c0_1] : memref<8x256xf32, #tpu.memory_space<vmem>>, vector<8x256xf32>
    %c0_2 = arith.constant 0 : index
    %c0_3 = arith.constant 0 : index
    %4 = vector.load %arg5[%c0_2, %c0_3] : memref<8x16xbf16, #tpu.memory_space<vmem>>, vector<8x16xbf16>
    %c0_4 = arith.constant 0 : index
    %c0_5 = arith.constant 0 : index
    %5 = vector.load %arg3[%c0_4, %c0_5] : memref<16x256xbf16, #tpu.memory_space<vmem>>, vector<16x256xbf16>
    %cst = arith.constant dense<0.000000e+00> : vector<8x256xf32>
    %6 = tpu.matmul %4, %5, %cst {dimension_numbers = #tpu.dot_dimension_numbers<[1], [0], [0], [1], [0, 0, 1, 1], [], []>} : vector<8x16xbf16>, vector<16x256xbf16>, vector<8x256xf32> -> vector<8x256xf32>
    %7 = arith.addf %3, %6 : vector<8x256xf32>
    %c0_6 = arith.constant 0 : index
    %c0_7 = arith.constant 0 : index
    %8 = vector.load %arg8[%c0_6, %c0_7] : memref<8x256xf32, #tpu.memory_space<vmem>>, vector<8x256xf32>
    tpu.vector_store %arg8[%c0_6, %c0_7], %7 {strides = array<i32>} : memref<8x256xf32, #tpu.memory_space<vmem>>, vector<8x256xf32>,
    %c0_8 = arith.constant 0 : index
    %c0_9 = arith.constant 0 : index
    %9 = vector.load %arg8[%c0_8, %c0_9] : memref<8x256xf32, #tpu.memory_space<vmem>>, vector<8x256xf32>
    %c0_10 = arith.constant 0 : index
    %c0_11 = arith.constant 0 : index
    %10 = vector.load %arg6[%c0_10, %c0_11] : memref<8x16xbf16, #tpu.memory_space<vmem>>, vector<8x16xbf16>
    %c0_12 = arith.constant 0 : index
    %c0_13 = arith.constant 0 : index
    %11 = vector.load %arg4[%c0_12, %c0_13] : memref<16x256xbf16, #tpu.memory_space<vmem>>, vector<16x256xbf16>
    %cst_14 = arith.constant dense<0.000000e+00> : vector<8x256xf32>
    %12 = tpu.matmul %10, %11, %cst_14 {dimension_numbers = #tpu.dot_dimension_numbers<[1], [0], [0], [1], [0, 0, 1, 1], [], []>} : vector<8x16xbf16>, vector<16x256xbf16>, vector<8x256xf32> -> vector<8x256xf32>
    %13 = arith.addf %9, %12 : vector<8x256xf32>
    %c0_15 = arith.constant 0 : index
    %c0_16 = arith.constant 0 : index
    %14 = vector.load %arg8[%c0_15, %c0_16] : memref<8x256xf32, #tpu.memory_space<vmem>>, vector<8x256xf32>
    tpu.vector_store %arg8[%c0_15, %c0_16], %13 {strides = array<i32>} : memref<8x256xf32, #tpu.memory_space<vmem>>, vector<8x256xf32>,
    %c0_i32_17 = arith.constant 0 : i32
    %15 = arith.cmpi eq, %arg1, %c0_i32_17 : i32
    %16 = arith.extui %15 : i1 to i32
    %c0_i32_18 = arith.constant 0 : i32
    %17 = arith.cmpi ne, %16, %c0_i32_18 : i32
    scf.if %17 {
      %c0_19 = arith.constant 0 : index
      %c0_20 = arith.constant 0 : index
      %18 = vector.load %arg8[%c0_19, %c0_20] : memref<8x256xf32, #tpu.memory_space<vmem>>, vector<8x256xf32>
      %c0_21 = arith.constant 0 : index
      %c0_22 = arith.constant 0 : index
      %19 = vector.load %arg2[%c0_21, %c0_22] : memref<8x256xf32, #tpu.memory_space<vmem>>, vector<8x256xf32>
      %20 = arith.addf %18, %19 : vector<8x256xf32>
      %c0_23 = arith.constant 0 : index
      %c0_24 = arith.constant 0 : index
      %21 = vector.load %arg7[%c0_23, %c0_24] : memref<8x256xf32, #tpu.memory_space<vmem>>, vector<8x256xf32>
      tpu.vector_store %arg7[%c0_23, %c0_24], %20 {strides = array<i32>} : memref<8x256xf32, #tpu.memory_space<vmem>>, vector<8x256xf32>,
    } else {
    }
    return
  }
  func.func @transform_0(%arg0: i32, %arg1: i32) -> (i32, i32) {
    %c0_i32 = arith.constant 0 : i32
    %c0_i32_0 = arith.constant 0 : i32
    return %arg0, %c0_i32 : i32, i32
  }
  func.func @transform_1(%arg0: i32, %arg1: i32) -> (i32, i32) {
    %c0_i32 = arith.constant 0 : i32
    %c0_i32_0 = arith.constant 0 : i32
    return %arg1, %c0_i32 : i32, i32
  }
  func.func @transform_2(%arg0: i32, %arg1: i32) -> (i32, i32) {
    %c0_i32 = arith.constant 0 : i32
    %c0_i32_0 = arith.constant 0 : i32
    return %arg1, %c0_i32 : i32, i32
  }
  func.func @transform_3(%arg0: i32, %arg1: i32) -> (i32, i32) {
    %c0_i32 = arith.constant 0 : i32
    return %arg0, %arg1 : i32, i32
  }
  func.func @transform_4(%arg0: i32, %arg1: i32) -> (i32, i32) {
    %c0_i32 = arith.constant 0 : i32
    return %arg0, %arg1 : i32, i32
  }
  func.func @transform_5(%arg0: i32, %arg1: i32) -> (i32, i32) {
    %c0_i32 = arith.constant 0 : i32
    %c0_i32_0 = arith.constant 0 : i32
    return %arg0, %c0_i32 : i32, i32
  }
}

</mosaic_0001>

<llo_original>
// kernel: tpu_custom_call.1
$region0: #{tpu_custom_call.1}
  #allocation0 [shape = 'u32[]', space=smem, size = 0x4, offset = 0x4, fixed_abs, tag = 'smem constant byte address 0x4 - core index']
  #allocation1 [shape = 'u32[144,128]{1,0:T(1,128)}', space=vmem, size = 0x12000, scoped, tag = 'internal scratch']
  #allocation2 [shape = 'f32[8,256]{1,0:T(8,128)}', space=vmem, size = 0x2000, scoped, tag = 'scratch operand']
  %s0 = inlined_call_operand.hbm [shape: f32[16,256], index: 0, kind: input, shape index: {}]
  %s1 = inlined_call_operand.hbm [shape: bf16[16,256], index: 1, kind: input, shape index: {}]
  %s2 = inlined_call_operand.hbm [shape: bf16[16,256], index: 2, kind: input, shape index: {}]
  %s3 = inlined_call_operand.hbm [shape: bf16[16,16], index: 3, kind: input, shape index: {}]
  %s4 = inlined_call_operand.hbm [shape: bf16[16,16], index: 4, kind: input, shape index: {}]
  %s5 = inlined_call_operand.hbm [shape: f32[16,256], index: 5, kind: output, shape index: {}]
  %s6 = sld [smem:[#allocation0]]
  $region81: #{tpu_custom_call.1} parent=0
    _
  %s8 = ssub.s32 1, %s6
  %s9 = scalar_select 0, %s8, %s6
  $region1: #{tpu_custom_call.1} parent=0
    #allocation3 [shape = 'u8[16384]{0}', space=vmem, size = 0x4000, scoped, tag = 'input window, operand 0']
    #allocation4 [shape = 's32[2]{0}', space=sflag, size = 0x8, scoped, tag = 'scoped memory for tpu_custom_call.1']
    #allocation5 [shape = 's32[2]{0}', space=sflag, size = 0x8, scoped, tag = 'scoped memory for tpu_custom_call.1']
    #allocation6 [shape = 'u8[8192]{0}', space=vmem, size = 0x2000, scoped, tag = 'input window, operand 1, single buffered']
    #allocation7 [shape = 's32[1]{0}', space=sflag, size = 0x4, scoped, tag = 'scoped memory for tpu_custom_call.1']
    #allocation8 [shape = 'u8[8192]{0}', space=vmem, size = 0x2000, scoped, tag = 'input window, operand 2, single buffered']
    #allocation9 [shape = 'u8[4096]{0}', space=vmem, size = 0x1000, scoped, tag = 'input window, operand 3']
    #allocation10 [shape = 's32[2]{0}', space=sflag, size = 0x8, scoped, tag = 'scoped memory for tpu_custom_call.1']
    #allocation11 [shape = 'u8[4096]{0}', space=vmem, size = 0x1000, scoped, tag = 'input window, operand 4']
    #allocation12 [shape = 'u8[16384]{0}', space=vmem, size = 0x4000, scoped, tag = 'output window, operand 0']
    %10 = vsyncpa [#allocation4], 0
    %s11 = scalar_lea.sflag [#allocation4], 1
    %12 = vsyncpa %s11, 0
    %13 = vsyncpa [#allocation7], 0
    %14 = vsyncpa [#allocation10], 0
    %s15 = scalar_lea.sflag [#allocation10], 1
    %16 = vsyncpa %s15, 0
    %17 = vsyncpa [#allocation5], 0
    %s18 = scalar_lea.sflag [#allocation5], 1
    %19 = vsyncpa %s18, 0
    loop: start=0, step=1, limit=4
    $region2: #{tpu_custom_call.1} parent=1 // loop_pre_header
      _
    $region3: #{tpu_custom_call.1} parent=1 // loop_header
      %s21 = sphi 0, %s25
      %p22 = scmp.ge.s32.totalorder %s21, 4
      %s28 = sphi 0, %s40
      %s29 = sphi 0, %s36
      %s30 = sphi 0, %s28
      %s31 = sphi 0, %s29
      %s32 = sphi 0, %s30
      %s33 = sphi 0, %s31
      %s43 = sphi 0, %s45
      %s46 = sphi 0, %s43
      %s47 = sphi 0, %s46
      %s63 = sphi 0, %s47
      %s69 = sphi 0, %s71
      %s72 = sphi 0, %s69
      %s73 = sphi 0, %s72
      %s89 = sphi 0, %s73
      %s95 = sphi 0, %s97
      %s98 = sphi 0, %s95
      %s99 = sphi 0, %s98
      %s115 = sphi 0, %s99
      %s123 = sphi 0, %s125
      %s126 = sphi 0, %s123
      %s127 = sphi 0, %s126
      %s143 = sphi 0, %s127
      %s151 = sphi 0, %s153
      %s154 = sphi 0, %s151
      %s155 = sphi 0, %s154
      %s171 = sphi 0, %s155
      %s177 = sphi 0, %s179
      %s180 = sphi 0, %s177
      %s181 = sphi 0, %s180
      %s197 = sphi 0, %s181
    $region4: #{tpu_custom_call.1} parent=1 // loop_header_branch
      %24 = sbr.rel (%p22) target = $region8
    $region5: #{tpu_custom_call.1} parent=1 // loop_body
      %s26 = ssub.s32 %s21, 1
      %s27 = ssub.s32 %s21, 2
      %s34 = sadd.s32 1, %s29
      %p35 = scmp.ge.s32.totalorder %s34, 1
      %s36 = scalar_select %p35, 0, %s34
      %s37 = sadd.s32 1, %s28
      %s38 = scalar_select %p35, %s37, %s28
      %p39 = scmp.ge.s32.totalorder %s38, 2
      %s40 = scalar_select %p39, 0, %s38
      %s41 = ssub.s32 %s28, %s40
      %p42 = scmp.eq.s32.totalorder %s41, 0
      %s44 = sadd.s32 %s43, 1
      %s45 = scalar_select %p42, %s43, %s44
      %p48 = pneg %p42
      %p49 = scmp.eq.s32.totalorder %s21, 1
      %p50 = por %p48, %p49
      %p51 = scmp.ne.s32.totalorder %s43, %s46
      %p52 = scmp.eq.s32.totalorder %s21, 0
      %p53 = por %p51, %p52
      %p54 = scmp.ne.s32.totalorder %s43, %s46
      %p55 = scmp.eq.s32.totalorder %s26, 1
      %p56 = por %p54, %p55
      %p57 = scmp.ne.s32.totalorder %s46, %s47
      %p58 = scmp.eq.s32.totalorder %s26, 0
      %p59 = por %p57, %p58
      %p60 = scmp.ne.s32.totalorder %s46, %s47
      %p61 = scmp.eq.s32.totalorder %s27, 1
      %p62 = por %p60, %p61
      %p64 = scmp.ne.s32.totalorder %s47, %s63
      %p65 = scmp.eq.s32.totalorder %s27, 0
      %p66 = por %p64, %p65
      %s67 = ssub.s32 %s29, %s36
      %p68 = scmp.eq.s32.totalorder %s67, 0
      %s70 = sadd.s32 %s69, 1
      %s71 = scalar_select %p68, %s69, %s70
      %p74 = pneg %p68
      %p75 = scmp.eq.s32.totalorder %s21, 1
      %p76 = por %p74, %p75
      %p77 = scmp.ne.s32.totalorder %s69, %s72
      %p78 = scmp.eq.s32.totalorder %s21, 0
      %p79 = por %p77, %p78
      %p80 = scmp.ne.s32.totalorder %s69, %s72
      %p81 = scmp.eq.s32.totalorder %s26, 1
      %p82 = por %p80, %p81
      %p83 = scmp.ne.s32.totalorder %s72, %s73
      %p84 = scmp.eq.s32.totalorder %s26, 0
      %p85 = por %p83, %p84
      %p86 = scmp.ne.s32.totalorder %s72, %s73
      %p87 = scmp.eq.s32.totalorder %s27, 1
      %p88 = por %p86, %p87
      %p90 = scmp.ne.s32.totalorder %s73, %s89
      %p91 = scmp.eq.s32.totalorder %s27, 0
      %p92 = por %p90, %p91
      %s93 = ssub.s32 %s29, %s36
      %p94 = scmp.eq.s32.totalorder %s93, 0
      %s96 = sadd.s32 %s95, 1
      %s97 = scalar_select %p94, %s95, %s96
      %p100 = pneg %p94
      %p101 = scmp.eq.s32.totalorder %s21, 1
      %p102 = por %p100, %p101
      %p103 = scmp.ne.s32.totalorder %s95, %s98
      %p104 = scmp.eq.s32.totalorder %s21, 0
      %p105 = por %p103, %p104
      %p106 = scmp.ne.s32.totalorder %s95, %s98
      %p107 = scmp.eq.s32.totalorder %s26, 1
      %p108 = por %p106, %p107
      %p109 = scmp.ne.s32.totalorder %s98, %s99
      %p110 = scmp.eq.s32.totalorder %s26, 0
      %p111 = por %p109, %p110
      %p112 = scmp.ne.s32.totalorder %s98, %s99
      %p113 = scmp.eq.s32.totalorder %s27, 1
      %p114 = por %p112, %p113
      %p116 = scmp.ne.s32.totalorder %s99, %s115
      %p117 = scmp.eq.s32.totalorder %s27, 0
      %p118 = por %p116, %p117
      %s119 = ssub.s32 %s28, %s40
      %s120 = ssub.s32 %s29, %s36
      %s121 = sor.u32 %s119, %s120
      %p122 = scmp.eq.s32.totalorder %s121, 0
      %s124 = sadd.s32 %s123, 1
      %s125 = scalar_select %p122, %s123, %s124
      %p128 = pneg %p122
      %p129 = scmp.eq.s32.totalorder %s21, 1
      %p130 = por %p128, %p129
      %p131 = scmp.ne.s32.totalorder %s123, %s126
      %p132 = scmp.eq.s32.totalorder %s21, 0
      %p133 = por %p131, %p132
      %p134 = scmp.ne.s32.totalorder %s123, %s126
      %p135 = scmp.eq.s32.totalorder %s26, 1
      %p136 = por %p134, %p135
      %p137 = scmp.ne.s32.totalorder %s126, %s127
      %p138 = scmp.eq.s32.totalorder %s26, 0
      %p139 = por %p137, %p138
      %p140 = scmp.ne.s32.totalorder %s126, %s127
      %p141 = scmp.eq.s32.totalorder %s27, 1
      %p142 = por %p140, %p141
      %p144 = scmp.ne.s32.totalorder %s127, %s143
      %p145 = scmp.eq.s32.totalorder %s27, 0
      %p146 = por %p144, %p145
      %s147 = ssub.s32 %s28, %s40
      %s148 = ssub.s32 %s29, %s36
      %s149 = sor.u32 %s147, %s148
      %p150 = scmp.eq.s32.totalorder %s149, 0
      %s152 = sadd.s32 %s151, 1
      %s153 = scalar_select %p150, %s151, %s152
      %p156 = pneg %p150
      %p157 = scmp.eq.s32.totalorder %s21, 1
      %p158 = por %p156, %p157
      %p159 = scmp.ne.s32.totalorder %s151, %s154
      %p160 = scmp.eq.s32.totalorder %s21, 0
      %p161 = por %p159, %p160
      %p162 = scmp.ne.s32.totalorder %s151, %s154
      %p163 = scmp.eq.s32.totalorder %s26, 1
      %p164 = por %p162, %p163
      %p165 = scmp.ne.s32.totalorder %s154, %s155
      %p166 = scmp.eq.s32.totalorder %s26, 0
      %p167 = por %p165, %p166
      %p168 = scmp.ne.s32.totalorder %s154, %s155
      %p169 = scmp.eq.s32.totalorder %s27, 1
      %p170 = por %p168, %p169
      %p172 = scmp.ne.s32.totalorder %s155, %s171
      %p173 = scmp.eq.s32.totalorder %s27, 0
      %p174 = por %p172, %p173
      %s175 = ssub.s32 %s28, %s40
      %p176 = scmp.eq.s32.totalorder %s175, 0
      %s178 = sadd.s32 %s177, 1
      %s179 = scalar_select %p176, %s177, %s178
      %p182 = pneg %p176
      %p183 = scmp.eq.s32.totalorder %s21, 1
      %p184 = por %p182, %p183
      %p185 = scmp.ne.s32.totalorder %s177, %s180
      %p186 = scmp.eq.s32.totalorder %s21, 0
      %p187 = por %p185, %p186
      %p188 = scmp.ne.s32.totalorder %s177, %s180
      %p189 = scmp.eq.s32.totalorder %s26, 1
      %p190 = por %p188, %p189
      %p191 = scmp.ne.s32.totalorder %s180, %s181
      %p192 = scmp.eq.s32.totalorder %s26, 0
      %p193 = por %p191, %p192
      %p194 = scmp.ne.s32.totalorder %s180, %s181
      %p195 = scmp.eq.s32.totalorder %s27, 1
      %p196 = por %p194, %p195
      %p198 = scmp.ne.s32.totalorder %s181, %s197
      %p199 = scmp.eq.s32.totalorder %s27, 0
      %p200 = por %p198, %p199
      %p201 = scmp.le.s32.totalorder 1, %s21
      %p202 = scmp.lt.s32.totalorder %s21, 3
      %p203 = pnand %p201, %p202
      %p204 = pneg %p203
      // Predicated region
      $region9: #{tpu_custom_call.1} parent=5 // pred_check
        _
      $region10: #{tpu_custom_call.1} parent=5 // pred_check_branch
        %206 = sbr.rel (%p203) target = $region12
      $region11: #{tpu_custom_call.1} parent=5 // pred_region
        %s207 = ssub.s32 %s21, 1
        // Predicated region
        $region13: #{tpu_custom_call.1} parent=11 // pred_check
          %p208 = pneg %p85
        $region14: #{tpu_custom_call.1} parent=11 // pred_check_branch
          %210 = sbr.rel (%p208) target = $region16
        $region15: #{tpu_custom_call.1} parent=11 // pred_region
          %s211 = smul.u32 2, %s31
          %s213 = ssub.s32 256, 256
          %214 = vsyncadd [#allocation7], %s213
          %s215 = smul.addr %s211, 2
          %s216 = smul.addr %s215, 64
          %s217 = scalar_lea.hbm %s1, %s216
          %s218 = sshll.u32 [#allocation6], 4
          %s219 = int_to_ptr.vmem [resolvable:$true] %s218
          %224 = dma.hbm_to_vmem [thread:$0]  %s217, 256, %s219, [#allocation7], 128, 128, 8
        $region16: #{tpu_custom_call.1} parent=11 // pred_fallthru
          _
        // Predicated region
        $region17: #{tpu_custom_call.1} parent=11 // pred_check
          %p225 = pneg %p111
        $region18: #{tpu_custom_call.1} parent=11 // pred_check_branch
          %227 = sbr.rel (%p225) target = $region20
        $region19: #{tpu_custom_call.1} parent=11 // pred_region
          %s228 = smul.u32 2, %s31
          %s230 = ssub.s32 256, 256
          %231 = vsyncadd [#allocation7], %s230
          %s232 = smul.addr %s228, 2
          %s233 = smul.addr %s232, 64
          %s234 = scalar_lea.hbm %s2, %s233
          %s235 = sshll.u32 [#allocation8], 4
          %s236 = int_to_ptr.vmem [resolvable:$true] %s235
          %241 = dma.hbm_to_vmem [thread:$0]  %s234, 256, %s236, [#allocation7], 128, 128, 8
        $region20: #{tpu_custom_call.1} parent=11 // pred_fallthru
          _
      $region12: #{tpu_custom_call.1} parent=5 // pred_fallthru
        _
      %p242 = scmp.lt.s32.totalorder %s21, 2
      // Predicated region
      $region21: #{tpu_custom_call.1} parent=5 // pred_check
        %p243 = pneg %p242
      $region22: #{tpu_custom_call.1} parent=5 // pred_check_branch
        %245 = sbr.rel (%p243) target = $region24
      $region23: #{tpu_custom_call.1} parent=5 // pred_region
        // Predicated region
        $region25: #{tpu_custom_call.1} parent=23 // pred_check
          %p246 = pneg %p53
        $region26: #{tpu_custom_call.1} parent=23 // pred_check_branch
          %248 = sbr.rel (%p246) target = $region28
        $region27: #{tpu_custom_call.1} parent=23 // pred_region
          %s249 = sand.u32 %s43, 1
          %s250 = scalar_lea.sflag [#allocation4], %s249
          %s251 = sand.u32 %s43, 1
          %s252 = smul.addr %s251, 16
          %s253 = scalar_lea.vmem [#allocation3], %s252
          %s255 = ssub.s32 256, 256
          %256 = vsyncadd %s250, %s255
          %s257 = smul.addr %s28, 2
          %s258 = smul.addr %s257, 128
          %s259 = scalar_lea.hbm %s0, %s258
          %s261 = sshll.u32 %s253, 4
          %s262 = int_to_ptr.vmem [resolvable:$true] %s261
          %264 = dma.hbm_to_vmem [thread:$0]  %s259, 256, %s262, %s250
        $region28: #{tpu_custom_call.1} parent=23 // pred_fallthru
          _
        // Predicated region
        $region29: #{tpu_custom_call.1} parent=23 // pred_check
          %p265 = pneg %p133
        $region30: #{tpu_custom_call.1} parent=23 // pred_check_branch
          %267 = sbr.rel (%p265) target = $region32
        $region31: #{tpu_custom_call.1} parent=23 // pred_region
          %s268 = sand.u32 %s21, 1
          %s269 = scalar_lea.sflag [#allocation10], %s268
          %s270 = sand.u32 %s123, 1
          %s271 = smul.addr %s270, 4
          %s272 = scalar_lea.vmem [#allocation9], %s271
          %s274 = ssub.s32 64, 64
          %275 = vsyncadd %s269, %s274
          %s276 = sadd.s32 %s29, %s28
          %s277 = smul.addr %s276, 64
          %s278 = scalar_lea.hbm %s3, %s277
          %s280 = sshll.u32 %s272, 4
          %s281 = int_to_ptr.vmem [resolvable:$true] %s280
          %283 = dma.hbm_to_vmem [thread:$0]  %s278, 64, %s281, %s269
        $region32: #{tpu_custom_call.1} parent=23 // pred_fallthru
          _
        // Predicated region
        $region33: #{tpu_custom_call.1} parent=23 // pred_check
          %p284 = pneg %p161
        $region34: #{tpu_custom_call.1} parent=23 // pred_check_branch
          %286 = sbr.rel (%p284) target = $region36
        $region35: #{tpu_custom_call.1} parent=23 // pred_region
          %s287 = sand.u32 %s21, 1
          %s288 = scalar_lea.sflag [#allocation10], %s287
          %s289 = sand.u32 %s151, 1
          %s290 = smul.addr %s289, 4
          %s291 = scalar_lea.vmem [#allocation11], %s290
          %s293 = ssub.s32 64, 64
          %294 = vsyncadd %s288, %s293
          %s295 = sadd.s32 %s29, %s28
          %s296 = smul.addr %s295, 64
          %s297 = scalar_lea.hbm %s4, %s296
          %s299 = sshll.u32 %s291, 4
          %s300 = int_to_ptr.vmem [resolvable:$true] %s299
          %302 = dma.hbm_to_vmem [thread:$0]  %s297, 64, %s300, %s288
        $region36: #{tpu_custom_call.1} parent=23 // pred_fallthru
          _
      $region24: #{tpu_custom_call.1} parent=5 // pred_fallthru
        _
      %p303 = scmp.le.s32.totalorder 1, %s21
      %p304 = scmp.lt.s32.totalorder %s21, 3
      %p305 = pnand %p303, %p304
      %p306 = pneg %p305
      // Predicated region
      $region37: #{tpu_custom_call.1} parent=5 // pred_check
        _
      $region38: #{tpu_custom_call.1} parent=5 // pred_check_branch
        %308 = sbr.rel (%p305) target = $region40
      $region39: #{tpu_custom_call.1} parent=5 // pred_region
        %s309 = ssub.s32 %s21, 1
        %s310 = sand.u32 %s46, 1
        %s311 = scalar_lea.sflag [#allocation4], %s310
        %s312 = sand.u32 %s46, 1
        %s313 = smul.addr %s312, 16
        %s314 = scalar_lea.vmem [#allocation3], %s313
        // Predicated region
        $region41: #{tpu_custom_call.1} parent=39 // pred_check
          %p315 = pneg %p59
        $region42: #{tpu_custom_call.1} parent=39 // pred_check_branch
          %317 = sbr.rel (%p315) target = $region44
        $region43: #{tpu_custom_call.1} parent=39 // pred_region
          %318 = dma.done %s311, 256
        $region44: #{tpu_custom_call.1} parent=39 // pred_fallthru
          _
        // Predicated region
        $region45: #{tpu_custom_call.1} parent=39 // pred_check
          %p319 = pneg %p85
        $region46: #{tpu_custom_call.1} parent=39 // pred_check_branch
          %321 = sbr.rel (%p319) target = $region48
        $region47: #{tpu_custom_call.1} parent=39 // pred_region
          %322 = dma.done [#allocation7], 256
        $region48: #{tpu_custom_call.1} parent=39 // pred_fallthru
          _
        // Predicated region
        $region49: #{tpu_custom_call.1} parent=39 // pred_check
          %p323 = pneg %p111
        $region50: #{tpu_custom_call.1} parent=39 // pred_check_branch
          %325 = sbr.rel (%p323) target = $region52
        $region51: #{tpu_custom_call.1} parent=39 // pred_region
          %326 = dma.done [#allocation7], 256
        $region52: #{tpu_custom_call.1} parent=39 // pred_fallthru
          _
        %s327 = sand.u32 %s26, 1
        %s328 = scalar_lea.sflag [#allocation10], %s327
        %s329 = sand.u32 %s126, 1
        %s330 = smul.addr %s329, 4
        %s331 = scalar_lea.vmem [#allocation9], %s330
        // Predicated region
        $region53: #{tpu_custom_call.1} parent=39 // pred_check
          %p332 = pneg %p139
        $region54: #{tpu_custom_call.1} parent=39 // pred_check_branch
          %334 = sbr.rel (%p332) target = $region56
        $region55: #{tpu_custom_call.1} parent=39 // pred_region
          %335 = dma.done %s328, 64
        $region56: #{tpu_custom_call.1} parent=39 // pred_fallthru
          _
        %s336 = sand.u32 %s26, 1
        %s337 = scalar_lea.sflag [#allocation10], %s336
        %s338 = sand.u32 %s154, 1
        %s339 = smul.addr %s338, 4
        %s340 = scalar_lea.vmem [#allocation11], %s339
        // Predicated region
        $region57: #{tpu_custom_call.1} parent=39 // pred_check
          %p341 = pneg %p167
        $region58: #{tpu_custom_call.1} parent=39 // pred_check_branch
          %343 = sbr.rel (%p341) target = $region60
        $region59: #{tpu_custom_call.1} parent=39 // pred_region
          %344 = dma.done %s337, 64
        $region60: #{tpu_custom_call.1} parent=39 // pred_fallthru
          _
        %s345 = sand.u32 %s46, 1
        %s346 = scalar_lea.sflag [#allocation4], %s345
        %s347 = sand.u32 %s46, 1
        %s348 = smul.addr %s347, 16
        %s349 = scalar_lea.vmem [#allocation3], %s348
        %p350 = pneg %p59
        %p351 = pneg %p56
        %p352 = pneg %p85
        %p353 = pneg %p82
        %p354 = pneg %p111
        %p355 = pneg %p108
        %s356 = sand.u32 %s26, 1
        %s357 = scalar_lea.sflag [#allocation10], %s356
        %s358 = sand.u32 %s126, 1
        %s359 = smul.addr %s358, 4
        %s360 = scalar_lea.vmem [#allocation9], %s359
        %p361 = pneg %p139
        %p362 = pneg %p136
        %s363 = sand.u32 %s26, 1
        %s364 = scalar_lea.sflag [#allocation10], %s363
        %s365 = sand.u32 %s154, 1
        %s366 = smul.addr %s365, 4
        %s367 = scalar_lea.vmem [#allocation11], %s366
        %p368 = pneg %p167
        %p369 = pneg %p164
        %p370 = pneg %p193
        %p371 = pneg %p190
        %s372 = sand.u32 %s180, 1
        %s373 = scalar_lea.sflag [#allocation5], %s372
        %s374 = sand.u32 %s180, 1
        %s375 = smul.addr %s374, 16
        %s376 = scalar_lea.vmem [#allocation12], %s375
        %s377 = smul.u32 2, %s31
        %s378 = smul.u32 2, %s31
        %p380 = scmp.eq.s32.totalorder %s31, 0
        // Predicated region
        $region61: #{tpu_custom_call.1} parent=39 // pred_check
          %p381 = pneg %p380
        $region62: #{tpu_custom_call.1} parent=39 // pred_check_branch
          %383 = sbr.rel (%p381) target = $region64
        $region63: #{tpu_custom_call.1} parent=39 // pred_region
          %384 = vst [vmem:[#allocation2] sm:$0xff] 0.0
          %385 = vst [vmem:[#allocation2 + $0x8] sm:$0xff] 0.0
        $region64: #{tpu_custom_call.1} parent=39 // pred_fallthru
          _
        %v386 = vld [vmem:[#allocation2] sm:$0xff]
        %v387 = vld [vmem:[#allocation2 + $0x8] sm:$0xff]
        %v388 = vld [vmem:[%s331] sm:$0xf]
        %v389 = vld [vmem:[#allocation6] sm:$0xff]
        %v390 = vld [vmem:[#allocation6 + $0x8] sm:$0xff]
        %v393 = vunpack.c.l.b16 %v389
        %v394 = vunpack.c.h.b16 %v389
        %v395 = vunpack.c.l.b16 %v390
        %v396 = vunpack.c.h.b16 %v390
        %v397 = vpack.c.b16 %v395, %v393
        %v398 = vpack.c.b16 %v396, %v394
        %vm401 = vcmask 130048
        %v403 = vsel %vm401, %v388, 0
        %405 = vmatprep.subr.bf16.mxu0 0
        %406 = vmatpush1.bf16.msra.mxu0 0
        %407 = vmatprep.subr.bf16.mxu0 0
        %408 = vmatpush1.bf16.msra.mxu0 0
        %409 = vmatprep.subr.bf16.mxu0 0
        %410 = vmatpush1.bf16.msra.mxu0 0
        %411 = vmatprep.subr.bf16.mxu0 0
        %412 = vmatpush1.bf16.msra.mxu0 0
        %413 = vmatprep.subr.bf16.mxu0 0
        %414 = vmatpush1.bf16.msra.mxu0 0
        %415 = vmatprep.subr.bf16.mxu0 0
        %416 = vmatpush1.bf16.msra.mxu0 0
        %417 = vmatprep.subr.bf16.mxu0 0
        %418 = vmatpush1.bf16.msra.mxu0 0
        %419 = vmatprep.subr.bf16.mxu0 %v398
        %420 = vmatpush1.bf16.msra.mxu0 %v397
        %421 = vmatprep.subr.bf16.mxu0 0
        %422 = vmatpush2.bf16.msra.mxu0 0
        %423 = vmatprep.subr.bf16.mxu0 0
        %424 = vmatpush2.bf16.msra.mxu0 0
        %425 = vmatprep.subr.bf16.mxu0 0
        %426 = vmatpush2.bf16.msra.mxu0 0
        %427 = vmatprep.subr.bf16.mxu0 0
        %428 = vmatpush2.bf16.msra.mxu0 0
        %429 = vmatprep.subr.bf16.mxu0 0
        %430 = vmatpush2.bf16.msra.mxu0 0
        %431 = vmatprep.subr.bf16.mxu0 0
        %432 = vmatpush2.bf16.msra.mxu0 0
        %433 = vmatprep.subr.bf16.mxu0 0
        %434 = vmatpush2.bf16.msra.mxu0 0
        %435 = vmatprep.subr.bf16.mxu0 0
        %436 = vmatpush2.bf16.msra.mxu0 0
        %437 = vmatprep.mubr.bf16.mxu0 0
        %438 = vmatmul.mubr.bf16.gmra.mxu0 %v403
        %v439 = vpop.f32.mrf.mxu0
        %v440 = vadd.f32 0.0, %v439
        %v441 = vpop.f32.mrf.mxu0
        %v442 = vadd.f32 0.0, %v441
        %v443 = vpop.f32.mrf.mxu0
        %v444 = vpop.f32.mrf.mxu0
        %445 = vdwg.mxu0
        %v446 = vadd.f32 %v386, %v440
        %v447 = vadd.f32 %v387, %v442
        %448 = vst [vmem:[#allocation2] sm:$0xff] %v446
        %449 = vst [vmem:[#allocation2 + $0x8] sm:$0xff] %v447
        %v450 = vld [vmem:[#allocation2] sm:$0xff]
        %v451 = vld [vmem:[#allocation2 + $0x8] sm:$0xff]
        %v452 = vld [vmem:[%s340] sm:$0xf]
        %v453 = vld [vmem:[#allocation8] sm:$0xff]
        %v454 = vld [vmem:[#allocation8 + $0x8] sm:$0xff]
        %v457 = vunpack.c.l.b16 %v453
        %v458 = vunpack.c.h.b16 %v453
        %v459 = vunpack.c.l.b16 %v454
        %v460 = vunpack.c.h.b16 %v454
        %v461 = vpack.c.b16 %v459, %v457
        %v462 = vpack.c.b16 %v460, %v458
        %v466 = vsel %vm401, %v452, 0
        %468 = vmatprep.subr.bf16.mxu0 0
        %469 = vmatpush1.bf16.msra.mxu0 0
        %470 = vmatprep.subr.bf16.mxu0 0
        %471 = vmatpush1.bf16.msra.mxu0 0
        %472 = vmatprep.subr.bf16.mxu0 0
        %473 = vmatpush1.bf16.msra.mxu0 0
        %474 = vmatprep.subr.bf16.mxu0 0
        %475 = vmatpush1.bf16.msra.mxu0 0
        %476 = vmatprep.subr.bf16.mxu0 0
        %477 = vmatpush1.bf16.msra.mxu0 0
        %478 = vmatprep.subr.bf16.mxu0 0
        %479 = vmatpush1.bf16.msra.mxu0 0
        %480 = vmatprep.subr.bf16.mxu0 0
        %481 = vmatpush1.bf16.msra.mxu0 0
        %482 = vmatprep.subr.bf16.mxu0 %v462
        %483 = vmatpush1.bf16.msra.mxu0 %v461
        %484 = vmatprep.subr.bf16.mxu0 0
        %485 = vmatpush2.bf16.msra.mxu0 0
        %486 = vmatprep.subr.bf16.mxu0 0
        %487 = vmatpush2.bf16.msra.mxu0 0
        %488 = vmatprep.subr.bf16.mxu0 0
        %489 = vmatpush2.bf16.msra.mxu0 0
        %490 = vmatprep.subr.bf16.mxu0 0
        %491 = vmatpush2.bf16.msra.mxu0 0
        %492 = vmatprep.subr.bf16.mxu0 0
        %493 = vmatpush2.bf16.msra.mxu0 0
        %494 = vmatprep.subr.bf16.mxu0 0
        %495 = vmatpush2.bf16.msra.mxu0 0
        %496 = vmatprep.subr.bf16.mxu0 0
        %497 = vmatpush2.bf16.msra.mxu0 0
        %498 = vmatprep.subr.bf16.mxu0 0
        %499 = vmatpush2.bf16.msra.mxu0 0
        %500 = vmatprep.mubr.bf16.mxu0 0
        %501 = vmatmul.mubr.bf16.gmra.mxu0 %v466
        %v502 = vpop.f32.mrf.mxu0
        %v503 = vadd.f32 0.0, %v502
        %v504 = vpop.f32.mrf.mxu0
        %v505 = vadd.f32 0.0, %v504
        %v506 = vpop.f32.mrf.mxu0
        %v507 = vpop.f32.mrf.mxu0
        %508 = vdwg.mxu0
        %v509 = vadd.f32 %v450, %v503
        %v510 = vadd.f32 %v451, %v505
        %511 = vst [vmem:[#allocation2] sm:$0xff] %v509
        %512 = vst [vmem:[#allocation2 + $0x8] sm:$0xff] %v510
        // Predicated region
        $region65: #{tpu_custom_call.1} parent=39 // pred_check
          %p513 = pneg %p380
        $region66: #{tpu_custom_call.1} parent=39 // pred_check_branch
          %515 = sbr.rel (%p513) target = $region68
        $region67: #{tpu_custom_call.1} parent=39 // pred_region
          %v516 = vld [vmem:[#allocation2] sm:$0xff]
          %v517 = vld [vmem:[#allocation2 + $0x8] sm:$0xff]
          %v518 = vld [vmem:[%s314] sm:$0xff]
          %v519 = vld [vmem:[%s314 + $0x8] sm:$0xff]
          %v520 = vadd.f32 %v516, %v518
          %v521 = vadd.f32 %v517, %v519
          %522 = vst [vmem:[%s376] sm:$0xff] %v520
          %523 = vst [vmem:[%s376 + $0x8] sm:$0xff] %v521
        $region68: #{tpu_custom_call.1} parent=39 // pred_fallthru
          _
        %s524 = sand.u32 %s180, 1
        %s525 = scalar_lea.sflag [#allocation5], %s524
        %s526 = sand.u32 %s180, 1
        %s527 = smul.addr %s526, 16
        %s528 = scalar_lea.vmem [#allocation12], %s527
        // Predicated region
        $region69: #{tpu_custom_call.1} parent=39 // pred_check
          %p529 = pneg %p190
        $region70: #{tpu_custom_call.1} parent=39 // pred_check_branch
          %531 = sbr.rel (%p529) target = $region72
        $region71: #{tpu_custom_call.1} parent=39 // pred_region
          %s533 = ssub.s32 256, 256
          %534 = vsyncadd %s525, %s533
          %s535 = smul.addr %s30, 2
          %s536 = smul.addr %s535, 128
          %s537 = scalar_lea.hbm %s5, %s536
          %s539 = sshll.u32 %s528, 4
          %s540 = int_to_ptr.vmem [resolvable:$true] %s539
          %542 = dma.vmem_to_hbm [thread:$0]  %s540, 256, %s537, %s525
        $region72: #{tpu_custom_call.1} parent=39 // pred_fallthru
          _
      $region40: #{tpu_custom_call.1} parent=5 // pred_fallthru
        _
      %p543 = scmp.le.s32.totalorder 2, %s21
      // Predicated region
      $region73: #{tpu_custom_call.1} parent=5 // pred_check
        %p544 = pneg %p543
      $region74: #{tpu_custom_call.1} parent=5 // pred_check_branch
        %546 = sbr.rel (%p544) target = $region76
      $region75: #{tpu_custom_call.1} parent=5 // pred_region
        %s547 = ssub.s32 %s21, 2
        // Predicated region
        $region77: #{tpu_custom_call.1} parent=75 // pred_check
          %p548 = pneg %p196
        $region78: #{tpu_custom_call.1} parent=75 // pred_check_branch
          %550 = sbr.rel (%p548) target = $region80
        $region79: #{tpu_custom_call.1} parent=75 // pred_region
          %s551 = sand.u32 %s181, 1
          %s552 = scalar_lea.sflag [#allocation5], %s551
          %s553 = sand.u32 %s181, 1
          %s554 = smul.addr %s553, 16
          %s555 = scalar_lea.vmem [#allocation12], %s554
          %556 = dma.done %s552, 256
        $region80: #{tpu_custom_call.1} parent=75 // pred_fallthru
          _
      $region76: #{tpu_custom_call.1} parent=5 // pred_fallthru
        _
    $region6: #{tpu_custom_call.1} parent=1 // loop_footer
      %s25 = sadd.s32 1, %s21
    $region7: #{tpu_custom_call.1} parent=1 // loop_footer_branch
      %20 = sbr.rel target = $region3
    $region8: #{tpu_custom_call.1} parent=1 // loop_exit
      _
    %557 = vsyncpa [#allocation4], 1
    %s558 = scalar_lea.sflag [#allocation4], 1
    %559 = vsyncpa %s558, 1
    %560 = vsyncpa [#allocation7], 1
    %561 = vsyncpa [#allocation10], 1
    %s562 = scalar_lea.sflag [#allocation10], 1
    %563 = vsyncpa %s562, 1
    %564 = vsyncpa [#allocation5], 1
    %s565 = scalar_lea.sflag [#allocation5], 1
    %566 = vsyncpa %s565, 1

</llo_original>
